<compile_context>
chip_gen: v6e
topology: v6e:2x2x1
jax: 0.10.0
libtpu: 0.0.40
codegen_flags: <defaults>
</compile_context>

<pallas_src>
import itertools
import math
from collections import namedtuple

import jax
import jax.numpy as jnp
from jax.experimental import pallas as pl
from jax.experimental.pallas import tpu as pltpu
import numpy as np


# ----------------------------------------------------------------------------
# Mask construction (pure numpy port of make_mask, mask_type='densest')
# ----------------------------------------------------------------------------
def make_mask_densest(in_dim: int, out_dim: int) -> np.ndarray:
    assert out_dim < 2 ** in_dim
    assert in_dim > 0 and out_dim > 0
    mask = np.ones((out_dim, in_dim), dtype=np.float32)
    mask[0, :] = 1.0
    row_idx = 1
    if out_dim == 1:
        return mask
    for nz in range(1, in_dim):
        for zeros_in_row in itertools.combinations(range(in_dim), nz):
            mask[row_idx, list(zeros_in_row)] = 0.0
            row_idx += 1
            if row_idx >= out_dim:
                return mask
    return mask


# ----------------------------------------------------------------------------
# Pallas kernel: tiled matmul with K-reduction accumulator + bias finalize
#   x_ref   : [tb, tk]
#   w_ref   : [tk, tn]   (pre-blended effective weight, already transposed)
#   bias_ref: [1,  tn]
#   o_ref   : [tb, tn]
#   acc_ref : [tb, tn]   f32 VMEM scratch accumulator
# ----------------------------------------------------------------------------
def sparse_linear_kernel(x_ref, w_ref, bias_ref, o_ref, acc_ref):
    k = pl.program_id(2)

    @pl.when(k == 0)
    def _():
        acc_ref[...] = jnp.zeros_like(acc_ref)

    acc_ref[...] += jnp.dot(x_ref[...], w_ref[...],
                            preferred_element_type=jnp.float32)

    @pl.when(k == pl.num_programs(2) - 1)
    def _():
        o_ref[...] = (acc_ref[...] + bias_ref[...]).astype(o_ref.dtype)


# ----------------------------------------------------------------------------
# Per-generation tiling configuration
# ----------------------------------------------------------------------------
_TileCfg = namedtuple("_TileCfg", "tn tk tb_cap vmem_cap")


def _tpu_generation():
    try:
        kind = jax.devices()[0].device_kind.lower()
    except Exception:
        return None
    for gen in ("v7", "v6", "v5"):
        if gen in kind:
            return gen
    return None


def _tile_config(gen):
    if gen == "v7":   # 64 MiB VMEM, 256-wide MXU, 2 TCs
        return _TileCfg(tn=512, tk=512, tb_cap=512, vmem_cap=48 * 2 ** 20)
    if gen == "v6":   # 128 MiB VMEM, 256-wide MXU
        return _TileCfg(tn=512, tk=1024, tb_cap=512, vmem_cap=64 * 2 ** 20)
    if gen == "v5":   # 128-wide MXU, keep working set modest
        return _TileCfg(tn=256, tk=512, tb_cap=256, vmem_cap=64 * 2 ** 20)
    return _TileCfg(tn=256, tk=512, tb_cap=256, vmem_cap=48 * 2 ** 20)


def _round_up(v: int, m: int) -> int:
    return ((v + m - 1) // m) * m


def _choose_tb(batch: int, cap: int) -> int:
    """Batch tile: multiple of 8, <= cap, minimizing padding (prefer larger)."""
    b8 = _round_up(batch, 8)
    if b8 <= cap:
        return b8
    best, best_waste = cap, _round_up(batch, cap) - batch
    for tb in range(cap, 0, -8):
        waste = _round_up(batch, tb) - batch
        if waste < best_waste:
            best, best_waste = tb, waste
        if best_waste == 0:
            break
    return best


# ----------------------------------------------------------------------------
# Wrapper
# ----------------------------------------------------------------------------
def sparse_linear(x, weight, mask, normal_mask, bias, mask_constant=1.0,
                  matmul_dtype=None):
    """x: [B, in_dim]; weight/mask/normal_mask: [out_dim, in_dim]; bias: [out_dim]."""
    B, in_dim = x.shape
    out_dim = weight.shape[0]

    cfg = _tile_config(_tpu_generation())

    # Effective weight: one fused XLA elementwise op per call (hoisted out of
    # the kernel so only ONE weight-side stream is DMAed per tile).
    w_eff = weight * mask + (1.0 - mask) * mask_constant * normal_mask
    w_dtype = jnp.float32 if matmul_dtype is None else matmul_dtype

    # ---- tile selection ------------------------------------------------------
    N_pad = _round_up(out_dim, 128)
    tn = cfg.tn if N_pad % cfg.tn == 0 else (256 if N_pad % 256 == 0 else 128)

    K_pad = _round_up(in_dim, 128)
    tk = min(K_pad, cfg.tk)
    K_pad = _round_up(K_pad, tk)

    tb = _choose_tb(B, cfg.tb_cap)
    B_pad = _round_up(B, tb)

    # ---- layout plumbing (one-time XLA ops; padded cols/rows are zero) -------
    w_t = jnp.pad(w_eff.T.astype(w_dtype),
                  ((0, K_pad - in_dim), (0, N_pad - out_dim)))        # [K_pad, N_pad]
    bias_p = jnp.pad(bias.astype(jnp.float32),
                     (0, N_pad - out_dim)).reshape(1, N_pad)          # [1, N_pad]
    x_in = x if matmul_dtype is None else x.astype(matmul_dtype)
    x_p = jnp.pad(x_in, ((0, B_pad - B), (0, K_pad - in_dim)))        # [B_pad, K_pad]

    grid = (N_pad // tn, B_pad // tb, K_pad // tk)

    # ---- explicit VMEM budget (double-buffered inputs/outputs + accumulator) -
    bs_w = np.dtype(w_dtype).itemsize
    bs_x = np.dtype(x_in.dtype).itemsize
    bs_o = np.dtype(x.dtype).itemsize
    req = 2 * (tb * tk * bs_x + tk * tn * bs_w + tn * 4 + tb * tn * bs_o) + tb * tn * 4
    vmem_limit = int(min(cfg.vmem_cap, max(2 * req, 32 * 2 ** 20)))

    out_padded = pl.pallas_call(
        sparse_linear_kernel,
        out_shape=jax.ShapeDtypeStruct((B_pad, N_pad), x.dtype),
        grid_spec=pltpu.PrefetchScalarGridSpec(
            num_scalar_prefetch=0,
            grid=grid,
            in_specs=[
                pl.BlockSpec((tb, tk), lambda j, i, k: (i, k)),   # x
                pl.BlockSpec((tk, tn), lambda j, i, k: (k, j)),   # w_eff^T
                pl.BlockSpec((1, tn), lambda j, i, k: (0, j)),    # bias
            ],
            out_specs=pl.BlockSpec((tb, tn), lambda j, i, k: (i, j)),
            scratch_shapes=[pltpu.VMEM((tb, tn), jnp.float32)],
        ),
        compiler_params=pltpu.CompilerParams(
            dimension_semantics=("parallel", "parallel", "arbitrary"),
            vmem_limit_bytes=vmem_limit),
    )(x_p, w_t, bias_p)

    # Slice zero-padded rows/columns back off.
    return out_padded[:B, :out_dim]


# ----------------------------------------------------------------------------
# Main: deterministic synthetic params + small input
# ----------------------------------------------------------------------------
if __name__ == "__main__":
    in_dim, out_dim, batch = 32, 16, 8
    mask_constant = 1.0

    key = jax.random.PRNGKey(0)
    k_w, k_b, k_nm, k_x = jax.random.split(key, 4)

    # Kaiming-uniform(a=sqrt(5)) on weight -> U(-1/sqrt(fan_in), 1/sqrt(fan_in))
    bound = 1.0 / math.sqrt(in_dim)
    weight = jax.random.uniform(k_w, (out_dim, in_dim), jnp.float32,
                                minval=-bound, maxval=bound)
    bias = jax.random.uniform(k_b, (out_dim,), jnp.float32,
                              minval=-bound, maxval=bound)
    # normal_mask buffer (do_normal_mask=True -> standard normal, deterministic here)
    normal_mask = jax.random.normal(k_nm, (out_dim, in_dim), jnp.float32)
    # sparsity mask (mask_type='densest' is fully deterministic)
    mask = jnp.asarray(make_mask_densest(in_dim, out_dim))

    x = jax.random.normal(k_x, (batch, in_dim), jnp.float32)

    fwd = jax.jit(lambda x, w, m, nm, b: sparse_linear(
        x, w, m, nm, b, mask_constant=mask_constant))
    out = jax.block_until_ready(fwd(x, weight, mask, normal_mask, bias))

    # Pure-JAX reference for correctness.
    w_eff = weight * mask + (1.0 - mask) * mask_constant * normal_mask
    ref = x @ w_eff.T + bias
    np.testing.assert_allclose(np.asarray(out), np.asarray(ref),
                               rtol=1e-5, atol=1e-5)

    print("KERNEL_OK")
</pallas_src>

<mosaic_0001>
module attributes {stable_mosaic.version = 11 : i64} {
  func.func @sparse_linear_kernel(%arg0: i32, %arg1: i32, %arg2: i32, %arg3: memref<8x128xf32, #tpu.memory_space<vmem>>, %arg4: memref<128x128xf32, #tpu.memory_space<vmem>>, %arg5: memref<1x128xf32, #tpu.memory_space<vmem>>, %arg6: memref<8x128xf32, #tpu.memory_space<vmem>>, %arg7: memref<8x128xf32, #tpu.memory_space<vmem>>) attributes {dimension_semantics = [#tpu.dimension_semantics<parallel>, #tpu.dimension_semantics<parallel>, #tpu.dimension_semantics<arbitrary>], iteration_bounds = array<i64: 1, 1, 1>, scalar_prefetch = 0 : i64, scratch_operands = 1 : i64, tpu.core_type = #tpu.core_type<tc>, window_params = [{transform_indices = @transform_0, window_bounds = array<i64: 8, 128>}, {transform_indices = @transform_1, window_bounds = array<i64: 128, 128>}, {transform_indices = @transform_2, window_bounds = array<i64: 1, 128>}, {transform_indices = @transform_3, window_bounds = array<i64: 8, 128>}]} {
    %c0_i32 = arith.constant 0 : i32
    %0 = arith.cmpi eq, %arg2, %c0_i32 : i32
    %1 = arith.extui %0 : i1 to i32
    %c0_i32_0 = arith.constant 0 : i32
    %2 = arith.cmpi ne, %1, %c0_i32_0 : i32
    scf.if %2 {
      %cst_10 = arith.constant 0.000000e+00 : f32
      %12 = vector.broadcast %cst_10 : f32 to vector<8x128xf32>
      %c0_11 = arith.constant 0 : index
      %c0_12 = arith.constant 0 : index
      %13 = vector.load %arg7[%c0_11, %c0_12] : memref<8x128xf32, #tpu.memory_space<vmem>>, vector<8x128xf32>
      tpu.vector_store %arg7[%c0_11, %c0_12], %12 {strides = array<i32>} : memref<8x128xf32, #tpu.memory_space<vmem>>, vector<8x128xf32>,
    } else {
    }
    %c0 = arith.constant 0 : index
    %c0_1 = arith.constant 0 : index
    %3 = vector.load %arg7[%c0, %c0_1] : memref<8x128xf32, #tpu.memory_space<vmem>>, vector<8x128xf32>
    %c0_2 = arith.constant 0 : index
    %c0_3 = arith.constant 0 : index
    %4 = vector.load %arg3[%c0_2, %c0_3] : memref<8x128xf32, #tpu.memory_space<vmem>>, vector<8x128xf32>
    %c0_4 = arith.constant 0 : index
    %c0_5 = arith.constant 0 : index
    %5 = vector.load %arg4[%c0_4, %c0_5] : memref<128x128xf32, #tpu.memory_space<vmem>>, vector<128x128xf32>
    %cst = arith.constant dense<0.000000e+00> : vector<8x128xf32>
    %6 = tpu.matmul %4, %5, %cst {dimension_numbers = #tpu.dot_dimension_numbers<[1], [0], [0], [1], [0, 0, 1, 1], [], []>} : vector<8x128xf32>, vector<128x128xf32>, vector<8x128xf32> -> vector<8x128xf32>
    %7 = arith.addf %3, %6 : vector<8x128xf32>
    %c0_6 = arith.constant 0 : index
    %c0_7 = arith.constant 0 : index
    %8 = vector.load %arg7[%c0_6, %c0_7] : memref<8x128xf32, #tpu.memory_space<vmem>>, vector<8x128xf32>
    tpu.vector_store %arg7[%c0_6, %c0_7], %7 {strides = array<i32>} : memref<8x128xf32, #tpu.memory_space<vmem>>, vector<8x128xf32>,
    %c0_i32_8 = arith.constant 0 : i32
    %9 = arith.cmpi eq, %arg2, %c0_i32_8 : i32
    %10 = arith.extui %9 : i1 to i32
    %c0_i32_9 = arith.constant 0 : i32
    %11 = arith.cmpi ne, %10, %c0_i32_9 : i32
    scf.if %11 {
      %c0_10 = arith.constant 0 : index
      %c0_11 = arith.constant 0 : index
      %12 = vector.load %arg7[%c0_10, %c0_11] : memref<8x128xf32, #tpu.memory_space<vmem>>, vector<8x128xf32>
      %c0_12 = arith.constant 0 : index
      %c0_13 = arith.constant 0 : index
      %13 = vector.load %arg5[%c0_12, %c0_13] : memref<1x128xf32, #tpu.memory_space<vmem>>, vector<1x128xf32>
      %14 = vector.broadcast %13 : vector<1x128xf32> to vector<8x128xf32>
      %15 = arith.addf %12, %14 : vector<8x128xf32>
      %c0_14 = arith.constant 0 : index
      %c0_15 = arith.constant 0 : index
      %16 = vector.load %arg6[%c0_14, %c0_15] : memref<8x128xf32, #tpu.memory_space<vmem>>, vector<8x128xf32>
      tpu.vector_store %arg6[%c0_14, %c0_15], %15 {strides = array<i32>} : memref<8x128xf32, #tpu.memory_space<vmem>>, vector<8x128xf32>,
    } else {
    }
    return
  }
  func.func @transform_0(%arg0: i32, %arg1: i32, %arg2: i32) -> (i32, i32) {
    %c0_i32 = arith.constant 0 : i32
    return %arg1, %arg2 : i32, i32
  }
  func.func @transform_1(%arg0: i32, %arg1: i32, %arg2: i32) -> (i32, i32) {
    %c0_i32 = arith.constant 0 : i32
    return %arg2, %arg0 : i32, i32
  }
  func.func @transform_2(%arg0: i32, %arg1: i32, %arg2: i32) -> (i32, i32) {
    %c0_i32 = arith.constant 0 : i32
    %c0_i32_0 = arith.constant 0 : i32
    return %c0_i32, %arg0 : i32, i32
  }
  func.func @transform_3(%arg0: i32, %arg1: i32, %arg2: i32) -> (i32, i32) {
    %c0_i32 = arith.constant 0 : i32
    return %arg1, %arg0 : i32, i32
  }
}

</mosaic_0001>

<llo_original>
// kernel: mul.2
$region0: #{mul.2}
  #allocation4 [shape = 's32[1]{0}', space=sflag, size = 0x4, scoped, tag = 'scoped memory for mul.2']
  %s0 = inlined_call_operand.hbm [shape: f32[16,32], index: 0, kind: input, shape index: {}]
  %s1 = inlined_call_operand.hbm [shape: f32[16,32], index: 1, kind: input, shape index: {}]
  %s2 = inlined_call_operand.vmem [shape: f32[16,32], index: 2, kind: output, shape index: {}]
  $region1: #{mul.2} parent=0
    #allocation0 [shape = 'u8[8192]{0}', space=vmem, size = 0x2000, scoped, tag = 'operand span for operand 0']
    #allocation1 [shape = 's32[1]{0}', space=sflag, size = 0x4, scoped, tag = 'scoped memory for mul.2']
    #allocation2 [shape = 'u8[8192]{0}', space=vmem, size = 0x2000, scoped, tag = 'operand span for operand 1']
    #allocation3 [shape = 's32[1]{0}', space=sflag, size = 0x4, scoped, tag = 'scoped memory for mul.2']
    %3 = vsyncpa [#allocation1], 0
    %4 = vsyncpa [#allocation3], 0
    %s6 = ssub.s32 256, 256
    %7 = vsyncadd [#allocation1], %s6
    %s8 = sshll.u32 [#allocation0], 4
    %s9 = int_to_ptr.vmem [resolvable:$true] %s8
    %14 = dma.hbm_to_vmem [thread:$0]  %s0, 256, %s9, [#allocation1], 128, 128, 8
    %s16 = ssub.s32 256, 256
    %17 = vsyncadd [#allocation3], %s16
    %s18 = sshll.u32 [#allocation2], 4
    %s19 = int_to_ptr.vmem [resolvable:$true] %s18
    %24 = dma.hbm_to_vmem [thread:$0]  %s1, 256, %s19, [#allocation3], 128, 128, 8
    %25 = dma.done [#allocation1], 256
    %26 = dma.done [#allocation3], 256
    %v27 = vld [vmem:[#allocation0] sm:$0xff]
    %v28 = vld [vmem:[#allocation2] sm:$0xff]
    %29 = xla_tuple %v27, %v28
    %30 = xla_tuple %29
    %v31 = vmul.f32 %v27, %v28
    %32 = xla_tuple %v31
    %33 = vst [vmem:[%s2] sm:$0xff] %v31
    %s34 = scalar_lea.vmem [#allocation0], 8
    %v35 = vld [vmem:[%s34] sm:$0xff]
    %s36 = scalar_lea.vmem [#allocation2], 8
    %v37 = vld [vmem:[%s36] sm:$0xff]
    %38 = xla_tuple %v35, %v37
    %39 = xla_tuple %38
    %v40 = vmul.f32 %v35, %v37
    %41 = xla_tuple %v40
    %s42 = scalar_lea.vmem %s2, 8
    %43 = vst [vmem:[%s42] sm:$0xff] %v40
    %44 = vsyncpa [#allocation1], 1
    %45 = vsyncpa [#allocation3], 1

// kernel: _lambda_.1
$region0: #{_lambda_.1}
  #allocation0 [shape = 'u32[]', space=smem, size = 0x4, offset = 0x4, fixed_abs, tag = 'smem constant byte address 0x4 - core index']
  #allocation1 [shape = 'u32[144,128]{1,0:T(1,128)}', space=vmem, size = 0x12000, scoped, tag = 'internal scratch']
  #allocation2 [shape = 'f32[8,128]{1,0:T(8,128)}', space=vmem, size = 0x1000, scoped, tag = 'scratch operand']
  %s0 = inlined_call_operand.vmem [shape: f32[8,128], index: 0, kind: input, shape index: {}]
  %s1 = inlined_call_operand.vmem [shape: f32[128,128], index: 1, kind: input, shape index: {}]
  %s2 = inlined_call_operand.vmem [shape: f32[1,128], index: 2, kind: input, shape index: {}]
  %s3 = inlined_call_operand.hbm [shape: f32[8,128], index: 3, kind: output, shape index: {}]
  %s4 = sld [smem:[#allocation0]]
  $region30: #{_lambda_.1} parent=0
    _
  %s6 = ssub.s32 1, %s4
  %s7 = scalar_select 0, %s6, %s4
  $region1: #{_lambda_.1} parent=0
    #allocation3 [shape = 'u8[4096]{0}', space=vmem, size = 0x1000, scoped, tag = 'output window, operand 0, single buffered']
    #allocation4 [shape = 's32[1]{0}', space=sflag, size = 0x4, scoped, tag = 'scoped memory for _lambda_.1']
    %8 = vsyncpa [#allocation4], 0
    // Predicated region
    $region2: #{_lambda_.1} parent=1 // pred_check
      _
    $region3: #{_lambda_.1} parent=1 // pred_check_branch
      %10 = sbr.rel (0) target = $region5
    $region4: #{_lambda_.1} parent=1 // pred_region
      _
    $region5: #{_lambda_.1} parent=1 // pred_fallthru
      _
    // Predicated region
    $region6: #{_lambda_.1} parent=1 // pred_check
      _
    $region7: #{_lambda_.1} parent=1 // pred_check_branch
      %12 = sbr.rel (0) target = $region9
    $region8: #{_lambda_.1} parent=1 // pred_region
      _
    $region9: #{_lambda_.1} parent=1 // pred_fallthru
      _
    // Predicated region
    $region10: #{_lambda_.1} parent=1 // pred_check
      _
    $region11: #{_lambda_.1} parent=1 // pred_check_branch
      %14 = sbr.rel (0) target = $region13
    $region12: #{_lambda_.1} parent=1 // pred_region
      _
    $region13: #{_lambda_.1} parent=1 // pred_fallthru
      _
    %p15 = scmp.eq.s32.totalorder 0, 0
    // Predicated region
    $region14: #{_lambda_.1} parent=1 // pred_check
      %p16 = pneg %p15
    $region15: #{_lambda_.1} parent=1 // pred_check_branch
      %18 = sbr.rel (%p16) target = $region17
    $region16: #{_lambda_.1} parent=1 // pred_region
      %19 = vst [vmem:[#allocation2] sm:$0xff] 0.0
    $region17: #{_lambda_.1} parent=1 // pred_fallthru
      _
    %v20 = vld [vmem:[#allocation2] sm:$0xff]
    %v21 = vld [vmem:[%s0] sm:$0xff]
    %v22 = vld [vmem:[%s1] sm:$0xff]
    %v23 = vld [vmem:[%s1 + $0x8] sm:$0xff]
    %v24 = vld [vmem:[%s1 + $0x10] sm:$0xff]
    %v25 = vld [vmem:[%s1 + $0x18] sm:$0xff]
    %v26 = vld [vmem:[%s1 + $0x20] sm:$0xff]
    %v27 = vld [vmem:[%s1 + $0x28] sm:$0xff]
    %v28 = vld [vmem:[%s1 + $0x30] sm:$0xff]
    %v29 = vld [vmem:[%s1 + $0x38] sm:$0xff]
    %v30 = vld [vmem:[%s1 + $0x40] sm:$0xff]
    %v31 = vld [vmem:[%s1 + $0x48] sm:$0xff]
    %v32 = vld [vmem:[%s1 + $0x50] sm:$0xff]
    %v33 = vld [vmem:[%s1 + $0x58] sm:$0xff]
    %v34 = vld [vmem:[%s1 + $0x60] sm:$0xff]
    %v35 = vld [vmem:[%s1 + $0x68] sm:$0xff]
    %v36 = vld [vmem:[%s1 + $0x70] sm:$0xff]
    %v37 = vld [vmem:[%s1 + $0x78] sm:$0xff]
    %38 = vmatprep.subr.mxu0 0.0
    %39 = vmatpush1.msra.mxu0 %v37
    %40 = vmatprep.subr.mxu0 0.0
    %41 = vmatpush1.msra.mxu0 %v36
    %42 = vmatprep.subr.mxu0 0.0
    %43 = vmatpush1.msra.mxu0 %v35
    %44 = vmatprep.subr.mxu0 0.0
    %45 = vmatpush1.msra.mxu0 %v34
    %46 = vmatprep.subr.mxu0 0.0
    %47 = vmatpush1.msra.mxu0 %v33
    %48 = vmatprep.subr.mxu0 0.0
    %49 = vmatpush1.msra.mxu0 %v32
    %50 = vmatprep.subr.mxu0 0.0
    %51 = vmatpush1.msra.mxu0 %v31
    %52 = vmatprep.subr.mxu0 0.0
    %53 = vmatpush1.msra.mxu0 %v30
    %54 = vmatprep.subr.mxu0 0.0
    %55 = vmatpush1.msra.mxu0 %v29
    %56 = vmatprep.subr.mxu0 0.0
    %57 = vmatpush1.msra.mxu0 %v28
    %58 = vmatprep.subr.mxu0 0.0
    %59 = vmatpush1.msra.mxu0 %v27
    %60 = vmatprep.subr.mxu0 0.0
    %61 = vmatpush1.msra.mxu0 %v26
    %62 = vmatprep.subr.mxu0 0.0
    %63 = vmatpush1.msra.mxu0 %v25
    %64 = vmatprep.subr.mxu0 0.0
    %65 = vmatpush1.msra.mxu0 %v24
    %66 = vmatprep.subr.mxu0 0.0
    %67 = vmatpush1.msra.mxu0 %v23
    %68 = vmatprep.subr.mxu0 0.0
    %69 = vmatpush1.msra.mxu0 %v22
    %70 = vmatprep.subr.mxu0 0.0
    %71 = vmatpush2.msra.mxu0 0.0
    %72 = vmatprep.subr.mxu0 0.0
    %73 = vmatpush2.msra.mxu0 0.0
    %74 = vmatprep.subr.mxu0 0.0
    %75 = vmatpush2.msra.mxu0 0.0
    %76 = vmatprep.subr.mxu0 0.0
    %77 = vmatpush2.msra.mxu0 0.0
    %78 = vmatprep.subr.mxu0 0.0
    %79 = vmatpush2.msra.mxu0 0.0
    %80 = vmatprep.subr.mxu0 0.0
    %81 = vmatpush2.msra.mxu0 0.0
    %82 = vmatprep.subr.mxu0 0.0
    %83 = vmatpush2.msra.mxu0 0.0
    %84 = vmatprep.subr.mxu0 0.0
    %85 = vmatpush2.msra.mxu0 0.0
    %86 = vmatprep.subr.mxu0 0.0
    %87 = vmatpush2.msra.mxu0 0.0
    %88 = vmatprep.subr.mxu0 0.0
    %89 = vmatpush2.msra.mxu0 0.0
    %90 = vmatprep.subr.mxu0 0.0
    %91 = vmatpush2.msra.mxu0 0.0
    %92 = vmatprep.subr.mxu0 0.0
    %93 = vmatpush2.msra.mxu0 0.0
    %94 = vmatprep.subr.mxu0 0.0
    %95 = vmatpush2.msra.mxu0 0.0
    %96 = vmatprep.subr.mxu0 0.0
    %97 = vmatpush2.msra.mxu0 0.0
    %98 = vmatprep.subr.mxu0 0.0
    %99 = vmatpush2.msra.mxu0 0.0
    %100 = vmatprep.subr.mxu0 0.0
    %101 = vmatpush2.msra.mxu0 0.0
    %102 = vmatprep.mubr.f32.mxu0 0.0
    %103 = vmatmul.mubr.f32.gmra.mxu0 %v21
    %v104 = vpop.f32.mrf.mxu0
    %v105 = vadd.f32 0.0, %v104
    %v106 = vpop.f32.mrf.mxu0
    %107 = vdwg.mxu0
    %v108 = vadd.f32 %v20, %v105
    %109 = vst [vmem:[#allocation2] sm:$0xff] %v108
    // Predicated region
    $region18: #{_lambda_.1} parent=1 // pred_check
      %p110 = pneg %p15
    $region19: #{_lambda_.1} parent=1 // pred_check_branch
      %112 = sbr.rel (%p110) target = $region21
    $region20: #{_lambda_.1} parent=1 // pred_region
      %v113 = vld [vmem:[#allocation2] sm:$0xff]
      %v114 = vld [vmem:[%s2] sm:$0x1]
      %v116 = vlaneseq
      %v117 = vshrl.u32 %v116, 7
      %v118 = vsub.s32 0, %v117
      %v119 = vrot.slane %v114, %v118
      %v121 = vadd.f32 %v113, %v119
      %122 = vst [vmem:[#allocation3] sm:$0xff] %v121
    $region21: #{_lambda_.1} parent=1 // pred_fallthru
      _
    // Predicated region
    $region22: #{_lambda_.1} parent=1 // pred_check
      _
    $region23: #{_lambda_.1} parent=1 // pred_check_branch
      %124 = sbr.rel (0) target = $region25
    $region24: #{_lambda_.1} parent=1 // pred_region
      %s126 = ssub.s32 128, 128
      %127 = vsyncadd [#allocation4], %s126
      %s129 = sshll.u32 [#allocation3], 4
      %s130 = int_to_ptr.vmem [resolvable:$true] %s129
      %132 = dma.vmem_to_hbm [thread:$0]  %s130, 128, %s3, [#allocation4]
    $region25: #{_lambda_.1} parent=1 // pred_fallthru
      _
    // Predicated region
    $region26: #{_lambda_.1} parent=1 // pred_check
      _
    $region27: #{_lambda_.1} parent=1 // pred_check_branch
      %134 = sbr.rel (0) target = $region29
    $region28: #{_lambda_.1} parent=1 // pred_region
      %135 = dma.done [#allocation4], 128
    $region29: #{_lambda_.1} parent=1 // pred_fallthru
      _
    %136 = vsyncpa [#allocation4], 1

</llo_original>
